<compile_context>
chip_gen: v7x
topology: tpu7x:2x2x1
jax: 0.10.0
libtpu: 0.0.40
codegen_flags: <defaults>
</compile_context>

<pallas_src>
import math

import jax
import jax.numpy as jnp
from jax.experimental import pallas as pl
from jax.experimental.pallas import tpu as pltpu

# ----------------------------- config -----------------------------------
BIT = 3
ONE_HOT = 2 ** BIT           # 8
SOLID_PARAM_SEQ = 4          # param tokens per solid
EMBED_DIM = 64               # DISCRIMINATOR_CONFIG['embed_dim']
MAX_SOLID = 16
BN_EPS = 1e-5
LEAKY_SLOPE = 0.01           # nn.LeakyReLU default

# packed-parameter slab layout (rows, all with E lanes)
W_ROWS = SOLID_PARAM_SEQ * ONE_HOT   # 32: fused weight Wc
CONST_ROWS = 8                       # bc, gamma, beta, w3_row, b3_row, 3x pad
PE_ROW_START = W_ROWS + CONST_ROWS   # 40 (sublane aligned); tiled pe follows

PHIGH = jax.lax.Precision.HIGHEST


# ----------------------------- kernel -----------------------------------
def solid_disc_kernel(x_ref, p_ref, out_ref):
    """One problem (one PyTorch forward call) per grid step.

    x_ref:   (N, SEQ*ONE_HOT)   N = B*S, rows ordered b-major / s-minor
    p_ref:   (40 + N, E) packed parameter slab (VMEM-resident across steps):
               rows [ 0:32) fused weight Wc
               row  32      fused bias  bc
               row  33      BN gamma
               row  34      BN beta
               row  35      final fc weight (as a row)
               row  36      final fc bias (broadcast across lanes)
               rows [37:40) zero padding (keeps pe sublane-aligned)
               rows [40:)   positional encoding, pre-tiled to N rows
    out_ref: (N, 1)
    """
    wc = p_ref[0:W_ROWS, :]                       # (32, E)
    bc = p_ref[W_ROWS:W_ROWS + 1, :]              # (1, E)
    gamma = p_ref[W_ROWS + 1:W_ROWS + 2, :]       # (1, E)
    beta = p_ref[W_ROWS + 2:W_ROWS + 3, :]        # (1, E)
    w3 = p_ref[W_ROWS + 3:W_ROWS + 4, :]          # (1, E)
    b3 = p_ref[W_ROWS + 4:W_ROWS + 5, 0:1]        # (1, 1)
    pe = p_ref[PE_ROW_START:, :]                  # (N, E) pre-tiled offline

    # --- fused logistic + param_fc Linear: one (N,32)@(32,E) MXU matmul ---
    h2 = jnp.dot(x_ref[...], wc,
                 preferred_element_type=jnp.float32,
                 precision=PHIGH) + bc

    # --- BatchNorm1d(E), training-mode batch stats (per problem), two-pass ---
    mean = jnp.mean(h2, axis=0, keepdims=True)              # (1, E)
    centered = h2 - mean
    var = jnp.mean(centered * centered, axis=0, keepdims=True)   # biased var
    h = centered * (gamma * jax.lax.rsqrt(var + BN_EPS)) + beta

    # --- LeakyReLU ---
    h = jnp.where(h > 0, h, LEAKY_SLOPE * h)

    # --- positional encoding: pure VPU add (pe already tiled to N rows) ---
    # TODO(synk): PositionalEncoding dropout is treated as identity (eval / p=0).
    h = h + pe

    # --- fc: Linear(E, 1) as VPU multiply + lane reduce (no width-1 MXU) ---
    y = jnp.sum(h * w3, axis=-1, keepdims=True) + b3         # (N, 1)
    out_ref[...] = jnp.where(y > 0, y, LEAKY_SLOPE * y)


# ----------------------------- wrappers -----------------------------------
def solid_discriminator_batched(param_batch, packed):
    """param_batch: (P, B, S, SEQ, 2**BIT) f32 -> (P, S, B, 1) f32.

    One pallas_call, grid over the P independent problems. The parameter slab
    is DMA'd once (constant index_map) and reused by every grid step.
    """
    P, B, S, SEQ, D = param_batch.shape
    N = B * S
    assert packed.shape == (PE_ROW_START + N, EMBED_DIM), packed.shape

    # glue: contiguous reshape only (no transpose, no tiling)
    x = param_batch.reshape(P, N, SEQ * D)        # (P, N, 32)

    # advisory cost estimate so XLA can schedule around the custom call
    flops_per = 2 * N * (SEQ * D) * EMBED_DIM + 12 * N * EMBED_DIM
    cost = pl.CostEstimate(
        flops=P * flops_per,
        transcendentals=P * EMBED_DIM,                       # rsqrt per lane
        bytes_accessed=(P * N * SEQ * D * 4
                        + packed.shape[0] * packed.shape[1] * 4
                        + P * N * 4),
    )

    out = pl.pallas_call(
        solid_disc_kernel,
        out_shape=jax.ShapeDtypeStruct((P, N, 1), jnp.float32),
        grid=(P,),
        in_specs=[
            # per-problem input block (leading dim squeezed away)
            pl.BlockSpec((None, N, SEQ * D), lambda p: (p, 0, 0)),
            # parameter slab: constant block index -> fetched once, resident
            pl.BlockSpec(packed.shape, lambda p: (0, 0)),
        ],
        out_specs=pl.BlockSpec((None, N, 1), lambda p: (p, 0, 0)),
        compiler_params=pltpu.CompilerParams(
            dimension_semantics=("parallel",)),   # v7x: problems split over TCs
        cost_estimate=cost,
    )(x, packed)

    # glue: back to the PyTorch output layout, per problem (S, B, 1)
    return jnp.transpose(out.reshape(P, B, S, 1), (0, 2, 1, 3))


def solid_discriminator(param, packed):
    """Single-problem convenience wrapper: (B,S,SEQ,2**BIT) -> (S,B,1)."""
    return solid_discriminator_batched(param[None], packed)[0]


# ----------------------------- params ------------------------------------
def make_params(key):
    E = EMBED_DIM
    ks = jax.random.split(key, 8)
    w1 = jax.random.normal(ks[0], (ONE_HOT, 32), jnp.float32) * 0.1
    b1 = jax.random.normal(ks[1], (1, 32), jnp.float32) * 0.05
    w2 = jax.random.normal(ks[2], (32 * SOLID_PARAM_SEQ, E), jnp.float32) * 0.05
    b2 = jax.random.normal(ks[3], (1, E), jnp.float32) * 0.05
    gamma = 1.0 + 0.1 * jax.random.normal(ks[4], (1, E), jnp.float32)
    beta = 0.1 * jax.random.normal(ks[5], (1, E), jnp.float32)
    w3 = jax.random.normal(ks[6], (E, 1), jnp.float32) * 0.1
    b3 = jax.random.normal(ks[7], (1, 1), jnp.float32) * 0.05

    # sinusoidal positional encoding, pe[:, 0::2]=sin, pe[:, 1::2]=cos
    pos = jnp.arange(MAX_SOLID, dtype=jnp.float32)[:, None]
    div = jnp.exp(jnp.arange(0, E, 2, dtype=jnp.float32) * (-math.log(10000.0) / E))
    pe = jnp.stack([jnp.sin(pos * div), jnp.cos(pos * div)], axis=-1).reshape(MAX_SOLID, E)

    return {
        "w1": w1, "b1": b1,
        "w2": w2.reshape(SOLID_PARAM_SEQ, 32, E), "w2_full": w2, "b2": b2,
        "gamma": gamma, "beta": beta,
        "w3": w3, "b3": b3,
        "pe": pe,
    }


def fuse_params(params, B, S):
    """Offline weight fusion + packing into a single (40 + B*S, E) f32 slab.

    Linear(2**BIT,32) followed by Linear(32*SEQ,E) fuse to:
      h2 = x_flat @ Wc + bc,  Wc[s*8:(s+1)*8] = w1 @ w2[s],
      bc = b2 + sum_s b1 @ w2[s]
    The positional encoding is pre-tiled to the N = B*S rows (b-major, s-minor)
    so the kernel's PE add is a plain broadcast-free VPU add.
    """
    E = EMBED_DIM
    w1, b1, w2 = params["w1"], params["b1"], params["w2"]
    wc = jnp.concatenate(
        [jnp.matmul(w1, w2[s], precision=PHIGH) for s in range(SOLID_PARAM_SEQ)],
        axis=0)                                                       # (32, E)
    bc = params["b2"] + sum(
        jnp.matmul(b1, w2[s], precision=PHIGH) for s in range(SOLID_PARAM_SEQ))
    consts = jnp.concatenate([
        bc,
        params["gamma"],
        params["beta"],
        params["w3"].T,                                   # (1, E)
        jnp.full((1, E), params["b3"][0, 0], jnp.float32),
        jnp.zeros((3, E), jnp.float32),                   # pad -> pe at row 40
    ], axis=0)                                            # (8, E)
    pe_tiled = jnp.tile(params["pe"][:S], (B, 1))         # (B*S, E)
    return jnp.concatenate([wc, consts, pe_tiled], axis=0)  # (40 + B*S, E)


# ----------------------------- reference ----------------------------------
def reference_single(param, params):
    """Pure-JAX mirror of the (un-fused) PyTorch forward, for verification."""
    B, S, SEQ, D = param.shape
    h1 = jnp.matmul(param, params["w1"], precision=PHIGH) + params["b1"][0]
    h1f = h1.reshape(B * S, SEQ * 32)                     # flatten(2,3)+flatten(0,1)
    h2 = jnp.matmul(h1f, params["w2_full"], precision=PHIGH) + params["b2"][0]
    mean = h2.mean(axis=0, keepdims=True)
    var = ((h2 - mean) ** 2).mean(axis=0, keepdims=True)  # biased (BN train)
    h = (h2 - mean) / jnp.sqrt(var + BN_EPS) * params["gamma"] + params["beta"]
    h = jnp.where(h > 0, h, LEAKY_SLOPE * h)
    h = h.reshape(B, S, EMBED_DIM).transpose(1, 0, 2)     # (S, B, E)
    h = h + params["pe"][:S][:, None, :]
    y = jnp.matmul(h, params["w3"], precision=PHIGH) + params["b3"][0]
    return jnp.where(y > 0, y, LEAKY_SLOPE * y)           # (S, B, 1)


def reference_batched(param_batch, params):
    return jax.vmap(reference_single, in_axes=(0, None))(param_batch, params)


# ----------------------------- main --------------------------------------
if __name__ == "__main__":
    key = jax.random.PRNGKey(0)
    kp, kx = jax.random.split(key)
    params = make_params(kp)

    P, B, S = 4, 2, 8                       # 4 independent problems per call
    packed = fuse_params(params, B, S)      # (56, 64) slab, fetched once
    param_batch = jax.random.normal(
        kx, (P, B, S, SOLID_PARAM_SEQ, ONE_HOT), jnp.float32)

    out = solid_discriminator_batched(param_batch, packed)
    out = jax.block_until_ready(out)

    ref = reference_batched(param_batch, params)
    assert out.shape == (P, S, B, 1), out.shape
    max_err = jnp.max(jnp.abs(out - ref))
    assert jnp.allclose(out, ref, atol=2e-4, rtol=2e-4), f"max err {max_err}"

    # single-problem wrapper (same kernel, P=1 grid) matches too
    out1 = jax.block_until_ready(solid_discriminator(param_batch[0], packed))
    assert out1.shape == (S, B, 1), out1.shape
    assert jnp.allclose(out1, ref[0], atol=2e-4, rtol=2e-4)

    print("KERNEL_OK")
</pallas_src>

<mosaic_0001>
module attributes {stable_mosaic.version = 11 : i64} {
  func.func @solid_disc_kernel(%arg0: i32, %arg1: memref<1x16x32xf32, #tpu.memory_space<vmem>>, %arg2: memref<56x64xf32, #tpu.memory_space<vmem>>, %arg3: memref<1x16x1xf32, #tpu.memory_space<vmem>>) attributes {dimension_semantics = [#tpu.dimension_semantics<parallel>], iteration_bounds = array<i64: 4>, scalar_prefetch = 0 : i64, scratch_operands = 0 : i64, tpu.core_type = #tpu.core_type<tc>, window_params = [{transform_indices = @transform_0, window_bounds = array<i64: 1, 16, 32>}, {pipeline_mode = #tpu.pipeline_mode<synchronous>, transform_indices = @transform_1, window_bounds = array<i64: 56, 64>}, {transform_indices = @transform_2, window_bounds = array<i64: 1, 16, 1>}]} {
    %c0 = arith.constant 0 : index
    %c0_0 = arith.constant 0 : index
    %0 = vector.load %arg2[%c0, %c0_0] : memref<56x64xf32, #tpu.memory_space<vmem>>, vector<32x64xf32>
    %c32 = arith.constant 32 : index
    %c0_1 = arith.constant 0 : index
    %1 = vector.load %arg2[%c32, %c0_1] : memref<56x64xf32, #tpu.memory_space<vmem>>, vector<1x64xf32>
    %c33 = arith.constant 33 : index
    %c0_2 = arith.constant 0 : index
    %2 = vector.load %arg2[%c33, %c0_2] : memref<56x64xf32, #tpu.memory_space<vmem>>, vector<1x64xf32>
    %c34 = arith.constant 34 : index
    %c0_3 = arith.constant 0 : index
    %3 = vector.load %arg2[%c34, %c0_3] : memref<56x64xf32, #tpu.memory_space<vmem>>, vector<1x64xf32>
    %c35 = arith.constant 35 : index
    %c0_4 = arith.constant 0 : index
    %4 = vector.load %arg2[%c35, %c0_4] : memref<56x64xf32, #tpu.memory_space<vmem>>, vector<1x64xf32>
    %c36 = arith.constant 36 : index
    %c0_5 = arith.constant 0 : index
    %5 = vector.load %arg2[%c36, %c0_5] : memref<56x64xf32, #tpu.memory_space<vmem>>, vector<1x1xf32>
    %c40 = arith.constant 40 : index
    %c0_6 = arith.constant 0 : index
    %6 = vector.load %arg2[%c40, %c0_6] : memref<56x64xf32, #tpu.memory_space<vmem>>, vector<16x64xf32>
    %c0_7 = arith.constant 0 : index
    %c0_8 = arith.constant 0 : index
    %c0_9 = arith.constant 0 : index
    %7 = vector.load %arg1[%c0_7, %c0_8, %c0_9] : memref<1x16x32xf32, #tpu.memory_space<vmem>>, vector<1x16x32xf32>
    %8 = vector.shape_cast %7 : vector<1x16x32xf32> to vector<16x32xf32>
    %cst = arith.constant dense<0.000000e+00> : vector<16x64xf32>
    %9 = tpu.matmul %8, %0, %cst {dimension_numbers = #tpu.dot_dimension_numbers<[1], [0], [0], [1], [0, 0, 1, 1], [], []>, precision = #tpu.contract_precision<fp32>} : vector<16x32xf32>, vector<32x64xf32>, vector<16x64xf32> -> vector<16x64xf32>
    %10 = vector.broadcast %1 : vector<1x64xf32> to vector<16x64xf32>
    %11 = arith.addf %9, %10 : vector<16x64xf32>
    %cst_10 = arith.constant dense<0.000000e+00> : vector<64xf32>
    %12 = vector.multi_reduction <add>, %11, %cst_10 [0] : vector<16x64xf32> to vector<64xf32>
    %13 = vector.shape_cast %12 : vector<64xf32> to vector<1x64xf32>
    %cst_11 = arith.constant 1.600000e+01 : f32
    %14 = vector.broadcast %cst_11 : f32 to vector<1x64xf32>
    %15 = arith.divf %13, %14 : vector<1x64xf32>
    %16 = vector.broadcast %15 : vector<1x64xf32> to vector<16x64xf32>
    %17 = arith.subf %11, %16 : vector<16x64xf32>
    %18 = arith.mulf %17, %17 : vector<16x64xf32>
    %cst_12 = arith.constant dense<0.000000e+00> : vector<64xf32>
    %19 = vector.multi_reduction <add>, %18, %cst_12 [0] : vector<16x64xf32> to vector<64xf32>
    %20 = vector.shape_cast %19 : vector<64xf32> to vector<1x64xf32>
    %cst_13 = arith.constant 1.600000e+01 : f32
    %21 = vector.broadcast %cst_13 : f32 to vector<1x64xf32>
    %22 = arith.divf %20, %21 : vector<1x64xf32>
    %cst_14 = arith.constant 9.99999974E-6 : f32
    %23 = vector.broadcast %cst_14 : f32 to vector<1x64xf32>
    %24 = arith.addf %22, %23 : vector<1x64xf32>
    %25 = math.rsqrt %24 : vector<1x64xf32>
    %26 = arith.mulf %2, %25 : vector<1x64xf32>
    %27 = vector.broadcast %26 : vector<1x64xf32> to vector<16x64xf32>
    %28 = arith.mulf %17, %27 : vector<16x64xf32>
    %29 = vector.broadcast %3 : vector<1x64xf32> to vector<16x64xf32>
    %30 = arith.addf %28, %29 : vector<16x64xf32>
    %cst_15 = arith.constant 0.000000e+00 : f32
    %31 = vector.broadcast %cst_15 : f32 to vector<16x64xf32>
    %32 = arith.cmpf ogt, %30, %31 : vector<16x64xf32>
    %cst_16 = arith.constant 0.00999999977 : f32
    %33 = vector.broadcast %cst_16 : f32 to vector<16x64xf32>
    %34 = arith.mulf %33, %30 : vector<16x64xf32>
    %35 = arith.select %32, %30, %34 : vector<16x64xi1>, vector<16x64xf32>
    %36 = arith.addf %35, %6 : vector<16x64xf32>
    %37 = vector.broadcast %4 : vector<1x64xf32> to vector<16x64xf32>
    %38 = arith.mulf %36, %37 : vector<16x64xf32>
    %cst_17 = arith.constant dense<0.000000e+00> : vector<16xf32>
    %39 = vector.multi_reduction <add>, %38, %cst_17 [1] : vector<16x64xf32> to vector<16xf32>
    %40 = vector.shape_cast %39 : vector<16xf32> to vector<16x1xf32>
    %41 = vector.broadcast %5 : vector<1x1xf32> to vector<16x1xf32>
    %42 = arith.addf %40, %41 : vector<16x1xf32>
    %cst_18 = arith.constant 0.000000e+00 : f32
    %43 = vector.broadcast %cst_18 : f32 to vector<16x1xf32>
    %44 = arith.cmpf ogt, %42, %43 : vector<16x1xf32>
    %cst_19 = arith.constant 0.00999999977 : f32
    %45 = vector.broadcast %cst_19 : f32 to vector<16x1xf32>
    %46 = arith.mulf %45, %42 : vector<16x1xf32>
    %47 = arith.select %44, %42, %46 : vector<16x1xi1>, vector<16x1xf32>
    %c0_20 = arith.constant 0 : index
    %c0_21 = arith.constant 0 : index
    %c0_22 = arith.constant 0 : index
    %48 = vector.load %arg3[%c0_20, %c0_21, %c0_22] : memref<1x16x1xf32, #tpu.memory_space<vmem>>, vector<1x16x1xf32>
    %49 = vector.shape_cast %48 : vector<1x16x1xf32> to vector<16x1xf32>
    %50 = vector.shape_cast %47 : vector<16x1xf32> to vector<1x16x1xf32>
    tpu.vector_store %arg3[%c0_20, %c0_21, %c0_22], %50 {strides = array<i32>} : memref<1x16x1xf32, #tpu.memory_space<vmem>>, vector<1x16x1xf32>,
    return
  }
  func.func @transform_0(%arg0: i32) -> (i32, i32, i32) {
    %c0_i32 = arith.constant 0 : i32
    %c0_i32_0 = arith.constant 0 : i32
    %c0_i32_1 = arith.constant 0 : i32
    return %arg0, %c0_i32, %c0_i32_0 : i32, i32, i32
  }
  func.func @transform_1(%arg0: i32) -> (i32, i32) {
    %c0_i32 = arith.constant 0 : i32
    %c0_i32_0 = arith.constant 0 : i32
    %c0_i32_1 = arith.constant 0 : i32
    return %c0_i32, %c0_i32_0 : i32, i32
  }
  func.func @transform_2(%arg0: i32) -> (i32, i32, i32) {
    %c0_i32 = arith.constant 0 : i32
    %c0_i32_0 = arith.constant 0 : i32
    %c0_i32_1 = arith.constant 0 : i32
    return %arg0, %c0_i32, %c0_i32_0 : i32, i32, i32
  }
}

</mosaic_0001>

<llo_original>
// kernel: tpu_custom_call.1
$region0: #{tpu_custom_call.1}
  #allocation0 [shape = 'u32[]', space=smem, size = 0x4, offset = 0x4, fixed_abs, tag = 'smem constant byte address 0x4 - core index']
  #allocation1 [shape = 'u32[144,128]{1,0:T(1,128)}', space=vmem, size = 0x12000, scoped, tag = 'internal scratch']
  %s0 = inlined_call_operand.hbm [shape: f32[4,16,32], index: 0, kind: input, shape index: {}]
  %s1 = inlined_call_operand.hbm [shape: f32[56,64], index: 1, kind: input, shape index: {}]
  %s2 = inlined_call_operand.vmem [shape: f32[4,16,1], index: 2, kind: output, shape index: {}]
  %s3 = sld [smem:[#allocation0]]
  $region49: #{tpu_custom_call.1} parent=0
    _
  %s5 = ssub.s32 1, %s3
  %s6 = scalar_select 0, %s5, %s3
  $region1: #{tpu_custom_call.1} parent=0
    #allocation2 [shape = 'u8[16384]{0}', space=vmem, size = 0x4000, scoped, tag = 'input window, operand 0']
    #allocation3 [shape = 's32[2]{0}', space=sflag, size = 0x8, scoped, tag = 'scoped memory for tpu_custom_call.1']
    #allocation4 [shape = 'u8[28672]{0}', space=vmem, size = 0x7000, scoped, tag = 'input window, operand 1, single buffered']
    #allocation5 [shape = 's32[1]{0}', space=sflag, size = 0x4, scoped, tag = 'scoped memory for tpu_custom_call.1']
    %7 = vsyncpa [#allocation3], 0
    %s8 = scalar_lea.sflag [#allocation3], 1
    %9 = vsyncpa %s8, 0
    %10 = vsyncpa [#allocation5], 0
    loop: start=0, step=1, limit=6
    $region2: #{tpu_custom_call.1} parent=1 // loop_pre_header
      _
    $region3: #{tpu_custom_call.1} parent=1 // loop_header
      %s12 = sphi 0, %s16
      %p13 = scmp.ge.s32.totalorder %s12, 6
      %s22 = sphi 0, %s24
      %s25 = sphi 0, %s22
      %s26 = sphi 0, %s25
      %s42 = sphi 0, %s26
      %s46 = sphi 0, %s46
      %s48 = sphi 0, %s46
      %s49 = sphi 0, %s48
      %s63 = sphi 0, %s49
      %s69 = sphi 0, %s71
      %s72 = sphi 0, %s69
      %s73 = sphi 0, %s72
      %s89 = sphi 0, %s73
    $region4: #{tpu_custom_call.1} parent=1 // loop_header_branch
      %15 = sbr.rel (%p13) target = $region8
    $region5: #{tpu_custom_call.1} parent=1 // loop_body
      %s17 = ssub.s32 %s12, 1
      %s18 = ssub.s32 %s12, 2
      %s19 = sadd.s32 %s12, 1
      %s20 = ssub.s32 %s12, %s19
      %p21 = scmp.eq.s32.totalorder %s20, 0
      %s23 = sadd.s32 %s22, 1
      %s24 = scalar_select %p21, %s22, %s23
      %p27 = pneg %p21
      %p28 = scmp.eq.s32.totalorder %s12, 3
      %p29 = por %p27, %p28
      %p30 = scmp.ne.s32.totalorder %s22, %s25
      %p31 = scmp.eq.s32.totalorder %s12, 0
      %p32 = por %p30, %p31
      %p33 = scmp.ne.s32.totalorder %s22, %s25
      %p34 = scmp.eq.s32.totalorder %s17, 3
      %p35 = por %p33, %p34
      %p36 = scmp.ne.s32.totalorder %s25, %s26
      %p37 = scmp.eq.s32.totalorder %s17, 0
      %p38 = por %p36, %p37
      %p39 = scmp.ne.s32.totalorder %s25, %s26
      %p40 = scmp.eq.s32.totalorder %s18, 3
      %p41 = por %p39, %p40
      %p43 = scmp.ne.s32.totalorder %s26, %s42
      %p44 = scmp.eq.s32.totalorder %s18, 0
      %p45 = por %p43, %p44
      %s47 = sadd.s32 %s46, 1
      %p50 = scmp.eq.s32.totalorder %s12, 3
      %p51 = scmp.ne.s32.totalorder %s46, %s48
      %p52 = scmp.eq.s32.totalorder %s12, 0
      %p53 = por %p51, %p52
      %p54 = scmp.ne.s32.totalorder %s46, %s48
      %p55 = scmp.eq.s32.totalorder %s17, 3
      %p56 = por %p54, %p55
      %p57 = scmp.ne.s32.totalorder %s48, %s49
      %p58 = scmp.eq.s32.totalorder %s17, 0
      %p59 = por %p57, %p58
      %p60 = scmp.ne.s32.totalorder %s48, %s49
      %p61 = scmp.eq.s32.totalorder %s18, 3
      %p62 = por %p60, %p61
      %p64 = scmp.ne.s32.totalorder %s49, %s63
      %p65 = scmp.eq.s32.totalorder %s18, 0
      %p66 = por %p64, %p65
      %s67 = ssub.s32 %s12, %s19
      %p68 = scmp.eq.s32.totalorder %s67, 0
      %s70 = sadd.s32 %s69, 1
      %s71 = scalar_select %p68, %s69, %s70
      %p74 = pneg %p68
      %p75 = scmp.eq.s32.totalorder %s12, 3
      %p76 = por %p74, %p75
      %p77 = scmp.ne.s32.totalorder %s69, %s72
      %p78 = scmp.eq.s32.totalorder %s12, 0
      %p79 = por %p77, %p78
      %p80 = scmp.ne.s32.totalorder %s69, %s72
      %p81 = scmp.eq.s32.totalorder %s17, 3
      %p82 = por %p80, %p81
      %p83 = scmp.ne.s32.totalorder %s72, %s73
      %p84 = scmp.eq.s32.totalorder %s17, 0
      %p85 = por %p83, %p84
      %p86 = scmp.ne.s32.totalorder %s72, %s73
      %p87 = scmp.eq.s32.totalorder %s18, 3
      %p88 = por %p86, %p87
      %p90 = scmp.ne.s32.totalorder %s73, %s89
      %p91 = scmp.eq.s32.totalorder %s18, 0
      %p92 = por %p90, %p91
      %p93 = scmp.le.s32.totalorder 1, %s12
      %p94 = scmp.lt.s32.totalorder %s12, 5
      %p95 = pnand %p93, %p94
      %p96 = pneg %p95
      // Predicated region
      $region9: #{tpu_custom_call.1} parent=5 // pred_check
        _
      $region10: #{tpu_custom_call.1} parent=5 // pred_check_branch
        %98 = sbr.rel (%p95) target = $region12
      $region11: #{tpu_custom_call.1} parent=5 // pred_region
        %s99 = ssub.s32 %s12, 1
        // Predicated region
        $region13: #{tpu_custom_call.1} parent=11 // pred_check
          %p100 = pneg %p59
        $region14: #{tpu_custom_call.1} parent=11 // pred_check_branch
          %102 = sbr.rel (%p100) target = $region16
        $region15: #{tpu_custom_call.1} parent=11 // pred_region
          %s104 = ssub.s32 896, 896
          %105 = vsyncadd [#allocation5], %s104
          %s106 = sshll.u32 [#allocation4], 4
          %s107 = int_to_ptr.vmem [resolvable:$true] %s106
          %112 = dma.hbm_to_vmem [thread:$0]  %s1, 896, %s107, [#allocation5], 128, 128, 8
        $region16: #{tpu_custom_call.1} parent=11 // pred_fallthru
          _
      $region12: #{tpu_custom_call.1} parent=5 // pred_fallthru
        _
      %p113 = scmp.lt.s32.totalorder %s12, 4
      // Predicated region
      $region17: #{tpu_custom_call.1} parent=5 // pred_check
        %p114 = pneg %p113
      $region18: #{tpu_custom_call.1} parent=5 // pred_check_branch
        %116 = sbr.rel (%p114) target = $region20
      $region19: #{tpu_custom_call.1} parent=5 // pred_region
        // Predicated region
        $region21: #{tpu_custom_call.1} parent=19 // pred_check
          %p117 = pneg %p32
        $region22: #{tpu_custom_call.1} parent=19 // pred_check_branch
          %119 = sbr.rel (%p117) target = $region24
        $region23: #{tpu_custom_call.1} parent=19 // pred_region
          %s120 = sand.u32 %s22, 1
          %s121 = scalar_lea.sflag [#allocation3], %s120
          %s122 = sand.u32 %s22, 1
          %s123 = smul.addr %s122, 16
          %s124 = scalar_lea.vmem [#allocation2], %s123
          %s126 = ssub.s32 256, 256
          %127 = vsyncadd %s121, %s126
          %s128 = smul.addr %s12, 2
          %s129 = smul.addr %s128, 128
          %s130 = scalar_lea.hbm %s0, %s129
          %s131 = sshll.u32 %s124, 4
          %s132 = int_to_ptr.vmem [resolvable:$true] %s131
          %137 = dma.hbm_to_vmem [thread:$0]  %s130, 256, %s132, %s121, 128, 128, 8
        $region24: #{tpu_custom_call.1} parent=19 // pred_fallthru
          _
      $region20: #{tpu_custom_call.1} parent=5 // pred_fallthru
        _
      %p138 = scmp.le.s32.totalorder 1, %s12
      %p139 = scmp.lt.s32.totalorder %s12, 5
      %p140 = pnand %p138, %p139
      %p141 = pneg %p140
      // Predicated region
      $region25: #{tpu_custom_call.1} parent=5 // pred_check
        _
      $region26: #{tpu_custom_call.1} parent=5 // pred_check_branch
        %143 = sbr.rel (%p140) target = $region28
      $region27: #{tpu_custom_call.1} parent=5 // pred_region
        %s144 = ssub.s32 %s12, 1
        %s145 = sand.u32 %s25, 1
        %s146 = scalar_lea.sflag [#allocation3], %s145
        %s147 = sand.u32 %s25, 1
        %s148 = smul.addr %s147, 16
        %s149 = scalar_lea.vmem [#allocation2], %s148
        // Predicated region
        $region29: #{tpu_custom_call.1} parent=27 // pred_check
          %p150 = pneg %p38
        $region30: #{tpu_custom_call.1} parent=27 // pred_check_branch
          %152 = sbr.rel (%p150) target = $region32
        $region31: #{tpu_custom_call.1} parent=27 // pred_region
          %153 = dma.done %s146, 256
        $region32: #{tpu_custom_call.1} parent=27 // pred_fallthru
          _
        // Predicated region
        $region33: #{tpu_custom_call.1} parent=27 // pred_check
          %p154 = pneg %p59
        $region34: #{tpu_custom_call.1} parent=27 // pred_check_branch
          %156 = sbr.rel (%p154) target = $region36
        $region35: #{tpu_custom_call.1} parent=27 // pred_region
          %157 = dma.done [#allocation5], 896
        $region36: #{tpu_custom_call.1} parent=27 // pred_fallthru
          _
        %s158 = sand.u32 %s25, 1
        %s159 = scalar_lea.sflag [#allocation3], %s158
        %s160 = sand.u32 %s25, 1
        %s161 = smul.addr %s160, 16
        %s162 = scalar_lea.vmem [#allocation2], %s161
        %p163 = pneg %p38
        %p164 = pneg %p35
        %p165 = pneg %p59
        %p166 = pneg %p56
        %p167 = pneg %p85
        %p168 = pneg %p82
        %p169 = scmp.lt.s32.totalorder %s17, 3
        %s170 = scalar_select %p169, %s17, 3
        %s171 = smul.addr %s170, 2
        %s172 = smul.addr %s171, 8
        %s173 = scalar_lea.vmem %s2, %s172
        %p174 = scmp.lt.s32.totalorder %s17, 3
        %s175 = scalar_select %p174, %s17, 3
        %s176 = smul.addr %s175, 2
        %s177 = smul.addr %s176, 8
        %s178 = scalar_lea.vmem %s2, %s177
        %v179 = vld [vmem:[#allocation4] sm:$0xff]
        %v180 = vld [vmem:[#allocation4 + $0x8] sm:$0xff]
        %v181 = vld [vmem:[#allocation4 + $0x10] sm:$0xff]
        %v182 = vld [vmem:[#allocation4 + $0x18] sm:$0xff]
        %v183 = vld [vmem:[#allocation4 + $0x20] sm:$0x1]
        %v184 = vld [vmem:[#allocation4 + $0x21] sm:$0x1]
        %v185 = vld [vmem:[#allocation4 + $0x22] sm:$0x1]
        %v186 = vld [vmem:[#allocation4 + $0x23] sm:$0x1]
        %v187 = vld [vmem:[#allocation4 + $0x24] sm:$0x1]
        %v188 = vld [vmem:[#allocation4 + $0x28] sm:$0xff]
        %v189 = vld [vmem:[#allocation4 + $0x30] sm:$0xff]
        %v190 = vld [vmem:[%s149] sm:$0xff]
        %v191 = vld [vmem:[%s149 + $0x8] sm:$0xff]
        %v192 = vlaneseq
        %v193 = vshrl.u32 %v192, 7
        %v194 = vsub.s32 0, %v193
        %v195 = vrot.slane %v183, %v194
        %vm196 = vcmask 261120
        %v198 = vsel %vm196, %v190, 0
        %v201 = vsel %vm196, %v191, 0
        %203 = vmatprep.subr.mxu0 0.0
        %v204 = vand.u32 %v179, 4294901760
        %205 = vmatpush1.msra.mxu0 %v204
        %206 = vmatprep.subr.mxu0 0.0
        %v207 = vand.u32 %v180, 4294901760
        %208 = vmatpush1.msra.mxu0 %v207
        %209 = vmatprep.subr.mxu0 0.0
        %v210 = vand.u32 %v181, 4294901760
        %211 = vmatpush1.msra.mxu0 %v210
        %212 = vmatprep.subr.mxu0 0.0
        %v213 = vand.u32 %v182, 4294901760
        %214 = vmatpush1.msra.mxu0 %v213
        %215 = vmatprep.subr.mxu0 0.0
        %216 = vmatpush1.msra.mxu0 0.0
        %217 = vmatprep.subr.mxu0 0.0
        %218 = vmatpush1.msra.mxu0 0.0
        %219 = vmatprep.subr.mxu0 0.0
        %220 = vmatpush1.msra.mxu0 0.0
        %221 = vmatprep.subr.mxu0 0.0
        %222 = vmatpush1.msra.mxu0 0.0
        %223 = vmatprep.subr.mxu0 0.0
        %224 = vmatpush1.msra.mxu0 0.0
        %225 = vmatprep.subr.mxu0 0.0
        %226 = vmatpush1.msra.mxu0 0.0
        %227 = vmatprep.subr.mxu0 0.0
        %228 = vmatpush1.msra.mxu0 0.0
        %229 = vmatprep.subr.mxu0 0.0
        %230 = vmatpush1.msra.mxu0 0.0
        %231 = vmatprep.subr.mxu0 0.0
        %232 = vmatpush1.msra.mxu0 0.0
        %233 = vmatprep.subr.mxu0 0.0
        %234 = vmatpush1.msra.mxu0 0.0
        %235 = vmatprep.subr.mxu0 0.0
        %236 = vmatpush1.msra.mxu0 0.0
        %237 = vmatprep.subr.mxu0 0.0
        %238 = vmatpush1.msra.mxu0 0.0
        %239 = vmatprep.subr.mxu0 0.0
        %240 = vmatpush1.msra.mxu0 0.0
        %241 = vmatprep.subr.mxu0 0.0
        %242 = vmatpush1.msra.mxu0 0.0
        %243 = vmatprep.subr.mxu0 0.0
        %244 = vmatpush1.msra.mxu0 0.0
        %245 = vmatprep.subr.mxu0 0.0
        %246 = vmatpush1.msra.mxu0 0.0
        %247 = vmatprep.subr.mxu0 0.0
        %248 = vmatpush1.msra.mxu0 0.0
        %249 = vmatprep.subr.mxu0 0.0
        %250 = vmatpush1.msra.mxu0 0.0
        %251 = vmatprep.subr.mxu0 0.0
        %252 = vmatpush1.msra.mxu0 0.0
        %253 = vmatprep.subr.mxu0 0.0
        %254 = vmatpush1.msra.mxu0 0.0
        %255 = vmatprep.subr.mxu0 0.0
        %256 = vmatpush1.msra.mxu0 0.0
        %257 = vmatprep.subr.mxu0 0.0
        %258 = vmatpush1.msra.mxu0 0.0
        %259 = vmatprep.subr.mxu0 0.0
        %260 = vmatpush1.msra.mxu0 0.0
        %261 = vmatprep.subr.mxu0 0.0
        %262 = vmatpush1.msra.mxu0 0.0
        %263 = vmatprep.subr.mxu0 0.0
        %264 = vmatpush1.msra.mxu0 0.0
        %265 = vmatprep.subr.mxu0 0.0
        %266 = vmatpush1.msra.mxu0 0.0
        %267 = vmatprep.subr.mxu0 0.0
        %268 = vmatpush1.msra.mxu0 0.0
        %269 = vmatprep.subr.mxu0 0.0
        %270 = vmatpush1.msra.mxu0 0.0
        %271 = vmatprep.mubr.f32.mxu0 0.0
        %v272 = vand.u32 %v198, 4294901760
        %v273 = vsub.f32 %v198, %v272
        %v274 = vand.u32 %v273, 4294901760
        %v275 = vsub.f32 %v273, %v274
        %v276 = vand.u32 %v275, 4294901760
        %277 = vmatmul.mubr.f32.gmra.mrb[0].mxu0 %v276
        %v278 = vpop.f32.mrb[0].mxu0
        %v279 = vadd.f32 %v195, %v278
        %v280 = vpop.f32.mrb[0].mxu0
        %281 = vmatprep.mubr.f32.mxu0 0.0
        %v282 = vand.u32 %v201, 4294901760
        %v283 = vsub.f32 %v201, %v282
        %v284 = vand.u32 %v283, 4294901760
        %v285 = vsub.f32 %v283, %v284
        %v286 = vand.u32 %v285, 4294901760
        %287 = vmatmul.mubr.f32.gmra.mrb[0].mxu0 %v286
        %v288 = vpop.f32.mrb[0].mxu0
        %v289 = vadd.f32 %v195, %v288
        %v290 = vpop.f32.mrb[0].mxu0
        %291 = vdwg.mxu0
        %292 = vmatprep.subr.mxu0 0.0
        %v293 = vand.u32 %v179, 4294901760
        %v294 = vsub.f32 %v179, %v293
        %v295 = vand.u32 %v294, 4294901760
        %v296 = vsub.f32 %v294, %v295
        %v297 = vand.u32 %v296, 4294901760
        %298 = vmatpush1.msra.mxu0 %v297
        %299 = vmatprep.subr.mxu0 0.0
        %v300 = vand.u32 %v180, 4294901760
        %v301 = vsub.f32 %v180, %v300
        %v302 = vand.u32 %v301, 4294901760
        %v303 = vsub.f32 %v301, %v302
        %v304 = vand.u32 %v303, 4294901760
        %305 = vmatpush1.msra.mxu0 %v304
        %306 = vmatprep.subr.mxu0 0.0
        %v307 = vand.u32 %v181, 4294901760
        %v308 = vsub.f32 %v181, %v307
        %v309 = vand.u32 %v308, 4294901760
        %v310 = vsub.f32 %v308, %v309
        %v311 = vand.u32 %v310, 4294901760
        %312 = vmatpush1.msra.mxu0 %v311
        %313 = vmatprep.subr.mxu0 0.0
        %v314 = vand.u32 %v182, 4294901760
        %v315 = vsub.f32 %v182, %v314
        %v316 = vand.u32 %v315, 4294901760
        %v317 = vsub.f32 %v315, %v316
        %v318 = vand.u32 %v317, 4294901760
        %319 = vmatpush1.msra.mxu0 %v318
        %320 = vmatprep.subr.mxu0 0.0
        %321 = vmatpush1.msra.mxu0 0.0
        %322 = vmatprep.subr.mxu0 0.0
        %323 = vmatpush1.msra.mxu0 0.0
        %324 = vmatprep.subr.mxu0 0.0
        %325 = vmatpush1.msra.mxu0 0.0
        %326 = vmatprep.subr.mxu0 0.0
        %327 = vmatpush1.msra.mxu0 0.0
        %328 = vmatprep.subr.mxu0 0.0
        %329 = vmatpush1.msra.mxu0 0.0
        %330 = vmatprep.subr.mxu0 0.0
        %331 = vmatpush1.msra.mxu0 0.0
        %332 = vmatprep.subr.mxu0 0.0
        %333 = vmatpush1.msra.mxu0 0.0
        %334 = vmatprep.subr.mxu0 0.0
        %335 = vmatpush1.msra.mxu0 0.0
        %336 = vmatprep.subr.mxu0 0.0
        %337 = vmatpush1.msra.mxu0 0.0
        %338 = vmatprep.subr.mxu0 0.0
        %339 = vmatpush1.msra.mxu0 0.0
        %340 = vmatprep.subr.mxu0 0.0
        %341 = vmatpush1.msra.mxu0 0.0
        %342 = vmatprep.subr.mxu0 0.0
        %343 = vmatpush1.msra.mxu0 0.0
        %344 = vmatprep.subr.mxu0 0.0
        %345 = vmatpush1.msra.mxu0 0.0
        %346 = vmatprep.subr.mxu0 0.0
        %347 = vmatpush1.msra.mxu0 0.0
        %348 = vmatprep.subr.mxu0 0.0
        %349 = vmatpush1.msra.mxu0 0.0
        %350 = vmatprep.subr.mxu0 0.0
        %351 = vmatpush1.msra.mxu0 0.0
        %352 = vmatprep.subr.mxu0 0.0
        %353 = vmatpush1.msra.mxu0 0.0
        %354 = vmatprep.subr.mxu0 0.0
        %355 = vmatpush1.msra.mxu0 0.0
        %356 = vmatprep.subr.mxu0 0.0
        %357 = vmatpush1.msra.mxu0 0.0
        %358 = vmatprep.subr.mxu0 0.0
        %359 = vmatpush1.msra.mxu0 0.0
        %360 = vmatprep.subr.mxu0 0.0
        %361 = vmatpush1.msra.mxu0 0.0
        %362 = vmatprep.subr.mxu0 0.0
        %363 = vmatpush1.msra.mxu0 0.0
        %364 = vmatprep.subr.mxu0 0.0
        %365 = vmatpush1.msra.mxu0 0.0
        %366 = vmatprep.subr.mxu0 0.0
        %367 = vmatpush1.msra.mxu0 0.0
        %368 = vmatprep.subr.mxu0 0.0
        %369 = vmatpush1.msra.mxu0 0.0
        %370 = vmatprep.subr.mxu0 0.0
        %371 = vmatpush1.msra.mxu0 0.0
        %372 = vmatprep.subr.mxu0 0.0
        %373 = vmatpush1.msra.mxu0 0.0
        %374 = vmatprep.subr.mxu0 0.0
        %375 = vmatpush1.msra.mxu0 0.0
        %376 = vmatprep.mubr.f32.mxu0 0.0
        %v377 = vand.u32 %v198, 4294901760
        %378 = vmatmul.mubr.f32.gmra.mrb[0].mxu0 %v377
        %v379 = vpop.f32.mrb[0].mxu0
        %v380 = vadd.f32 %v279, %v379
        %v381 = vpop.f32.mrb[0].mxu0
        %382 = vmatprep.mubr.f32.mxu0 0.0
        %v383 = vand.u32 %v201, 4294901760
        %384 = vmatmul.mubr.f32.gmra.mrb[0].mxu0 %v383
        %v385 = vpop.f32.mrb[0].mxu0
        %v386 = vadd.f32 %v289, %v385
        %v387 = vpop.f32.mrb[0].mxu0
        %388 = vdwg.mxu0
        %389 = vmatprep.subr.mxu0 0.0
        %v390 = vand.u32 %v179, 4294901760
        %v391 = vsub.f32 %v179, %v390
        %392 = vmatpush1.msra.mxu0 %v391
        %393 = vmatprep.subr.mxu0 0.0
        %v394 = vand.u32 %v180, 4294901760
        %v395 = vsub.f32 %v180, %v394
        %396 = vmatpush1.msra.mxu0 %v395
        %397 = vmatprep.subr.mxu0 0.0
        %v398 = vand.u32 %v181, 4294901760
        %v399 = vsub.f32 %v181, %v398
        %400 = vmatpush1.msra.mxu0 %v399
        %401 = vmatprep.subr.mxu0 0.0
        %v402 = vand.u32 %v182, 4294901760
        %v403 = vsub.f32 %v182, %v402
        %404 = vmatpush1.msra.mxu0 %v403
        %405 = vmatprep.subr.mxu0 0.0
        %406 = vmatpush1.msra.mxu0 0.0
        %407 = vmatprep.subr.mxu0 0.0
        %408 = vmatpush1.msra.mxu0 0.0
        %409 = vmatprep.subr.mxu0 0.0
        %410 = vmatpush1.msra.mxu0 0.0
        %411 = vmatprep.subr.mxu0 0.0
        %412 = vmatpush1.msra.mxu0 0.0
        %413 = vmatprep.subr.mxu0 0.0
        %414 = vmatpush1.msra.mxu0 0.0
        %415 = vmatprep.subr.mxu0 0.0
        %416 = vmatpush1.msra.mxu0 0.0
        %417 = vmatprep.subr.mxu0 0.0
        %418 = vmatpush1.msra.mxu0 0.0
        %419 = vmatprep.subr.mxu0 0.0
        %420 = vmatpush1.msra.mxu0 0.0
        %421 = vmatprep.subr.mxu0 0.0
        %422 = vmatpush1.msra.mxu0 0.0
        %423 = vmatprep.subr.mxu0 0.0
        %424 = vmatpush1.msra.mxu0 0.0
        %425 = vmatprep.subr.mxu0 0.0
        %426 = vmatpush1.msra.mxu0 0.0
        %427 = vmatprep.subr.mxu0 0.0
        %428 = vmatpush1.msra.mxu0 0.0
        %429 = vmatprep.subr.mxu0 0.0
        %430 = vmatpush1.msra.mxu0 0.0
        %431 = vmatprep.subr.mxu0 0.0
        %432 = vmatpush1.msra.mxu0 0.0
        %433 = vmatprep.subr.mxu0 0.0
        %434 = vmatpush1.msra.mxu0 0.0
        %435 = vmatprep.subr.mxu0 0.0
        %436 = vmatpush1.msra.mxu0 0.0
        %437 = vmatprep.subr.mxu0 0.0
        %438 = vmatpush1.msra.mxu0 0.0
        %439 = vmatprep.subr.mxu0 0.0
        %440 = vmatpush1.msra.mxu0 0.0
        %441 = vmatprep.subr.mxu0 0.0
        %442 = vmatpush1.msra.mxu0 0.0
        %443 = vmatprep.subr.mxu0 0.0
        %444 = vmatpush1.msra.mxu0 0.0
        %445 = vmatprep.subr.mxu0 0.0
        %446 = vmatpush1.msra.mxu0 0.0
        %447 = vmatprep.subr.mxu0 0.0
        %448 = vmatpush1.msra.mxu0 0.0
        %449 = vmatprep.subr.mxu0 0.0
        %450 = vmatpush1.msra.mxu0 0.0
        %451 = vmatprep.subr.mxu0 0.0
        %452 = vmatpush1.msra.mxu0 0.0
        %453 = vmatprep.subr.mxu0 0.0
        %454 = vmatpush1.msra.mxu0 0.0
        %455 = vmatprep.subr.mxu0 0.0
        %456 = vmatpush1.msra.mxu0 0.0
        %457 = vmatprep.subr.mxu0 0.0
        %458 = vmatpush1.msra.mxu0 0.0
        %459 = vmatprep.subr.mxu0 0.0
        %460 = vmatpush1.msra.mxu0 0.0
        %461 = vmatprep.mubr.f32.mxu0 0.0
        %v462 = vand.u32 %v198, 4294901760
        %v463 = vsub.f32 %v198, %v462
        %464 = vmatmul.mubr.f32.gmra.mrb[0].mxu0 %v463
        %v465 = vpop.f32.mrb[0].mxu0
        %v466 = vadd.f32 %v380, %v465
        %v467 = vpop.f32.mrb[0].mxu0
        %468 = vmatprep.mubr.f32.mxu0 0.0
        %v469 = vand.u32 %v201, 4294901760
        %v470 = vsub.f32 %v201, %v469
        %471 = vmatmul.mubr.f32.gmra.mrb[0].mxu0 %v470
        %v472 = vpop.f32.mrb[0].mxu0
        %v473 = vadd.f32 %v386, %v472
        %v474 = vpop.f32.mrb[0].mxu0
        %475 = vdwg.mxu0
        %476 = vmatprep.subr.mxu0 0.0
        %v477 = vand.u32 %v179, 4294901760
        %478 = vmatpush1.msra.mxu0 %v477
        %479 = vmatprep.subr.mxu0 0.0
        %v480 = vand.u32 %v180, 4294901760
        %481 = vmatpush1.msra.mxu0 %v480
        %482 = vmatprep.subr.mxu0 0.0
        %v483 = vand.u32 %v181, 4294901760
        %484 = vmatpush1.msra.mxu0 %v483
        %485 = vmatprep.subr.mxu0 0.0
        %v486 = vand.u32 %v182, 4294901760
        %487 = vmatpush1.msra.mxu0 %v486
        %488 = vmatprep.subr.mxu0 0.0
        %489 = vmatpush1.msra.mxu0 0.0
        %490 = vmatprep.subr.mxu0 0.0
        %491 = vmatpush1.msra.mxu0 0.0
        %492 = vmatprep.subr.mxu0 0.0
        %493 = vmatpush1.msra.mxu0 0.0
        %494 = vmatprep.subr.mxu0 0.0
        %495 = vmatpush1.msra.mxu0 0.0
        %496 = vmatprep.subr.mxu0 0.0
        %497 = vmatpush1.msra.mxu0 0.0
        %498 = vmatprep.subr.mxu0 0.0
        %499 = vmatpush1.msra.mxu0 0.0
        %500 = vmatprep.subr.mxu0 0.0
        %501 = vmatpush1.msra.mxu0 0.0
        %502 = vmatprep.subr.mxu0 0.0
        %503 = vmatpush1.msra.mxu0 0.0
        %504 = vmatprep.subr.mxu0 0.0
        %505 = vmatpush1.msra.mxu0 0.0
        %506 = vmatprep.subr.mxu0 0.0
        %507 = vmatpush1.msra.mxu0 0.0
        %508 = vmatprep.subr.mxu0 0.0
        %509 = vmatpush1.msra.mxu0 0.0
        %510 = vmatprep.subr.mxu0 0.0
        %511 = vmatpush1.msra.mxu0 0.0
        %512 = vmatprep.subr.mxu0 0.0
        %513 = vmatpush1.msra.mxu0 0.0
        %514 = vmatprep.subr.mxu0 0.0
        %515 = vmatpush1.msra.mxu0 0.0
        %516 = vmatprep.subr.mxu0 0.0
        %517 = vmatpush1.msra.mxu0 0.0
        %518 = vmatprep.subr.mxu0 0.0
        %519 = vmatpush1.msra.mxu0 0.0
        %520 = vmatprep.subr.mxu0 0.0
        %521 = vmatpush1.msra.mxu0 0.0
        %522 = vmatprep.subr.mxu0 0.0
        %523 = vmatpush1.msra.mxu0 0.0
        %524 = vmatprep.subr.mxu0 0.0
        %525 = vmatpush1.msra.mxu0 0.0
        %526 = vmatprep.subr.mxu0 0.0
        %527 = vmatpush1.msra.mxu0 0.0
        %528 = vmatprep.subr.mxu0 0.0
        %529 = vmatpush1.msra.mxu0 0.0
        %530 = vmatprep.subr.mxu0 0.0
        %531 = vmatpush1.msra.mxu0 0.0
        %532 = vmatprep.subr.mxu0 0.0
        %533 = vmatpush1.msra.mxu0 0.0
        %534 = vmatprep.subr.mxu0 0.0
        %535 = vmatpush1.msra.mxu0 0.0
        %536 = vmatprep.subr.mxu0 0.0
        %537 = vmatpush1.msra.mxu0 0.0
        %538 = vmatprep.subr.mxu0 0.0
        %539 = vmatpush1.msra.mxu0 0.0
        %540 = vmatprep.subr.mxu0 0.0
        %541 = vmatpush1.msra.mxu0 0.0
        %542 = vmatprep.subr.mxu0 0.0
        %543 = vmatpush1.msra.mxu0 0.0
        %544 = vmatprep.mubr.f32.mxu0 0.0
        %v545 = vand.u32 %v198, 4294901760
        %v546 = vsub.f32 %v198, %v545
        %v547 = vand.u32 %v546, 4294901760
        %548 = vmatmul.mubr.f32.gmra.mrb[0].mxu0 %v547
        %v549 = vpop.f32.mrb[0].mxu0
        %v550 = vadd.f32 %v466, %v549
        %v551 = vpop.f32.mrb[0].mxu0
        %552 = vmatprep.mubr.f32.mxu0 0.0
        %v553 = vand.u32 %v201, 4294901760
        %v554 = vsub.f32 %v201, %v553
        %v555 = vand.u32 %v554, 4294901760
        %556 = vmatmul.mubr.f32.gmra.mrb[0].mxu0 %v555
        %v557 = vpop.f32.mrb[0].mxu0
        %v558 = vadd.f32 %v473, %v557
        %v559 = vpop.f32.mrb[0].mxu0
        %560 = vdwg.mxu0
        %561 = vmatprep.subr.mxu0 0.0
        %v562 = vand.u32 %v179, 4294901760
        %v563 = vsub.f32 %v179, %v562
        %v564 = vand.u32 %v563, 4294901760
        %565 = vmatpush1.msra.mxu0 %v564
        %566 = vmatprep.subr.mxu0 0.0
        %v567 = vand.u32 %v180, 4294901760
        %v568 = vsub.f32 %v180, %v567
        %v569 = vand.u32 %v568, 4294901760
        %570 = vmatpush1.msra.mxu0 %v569
        %571 = vmatprep.subr.mxu0 0.0
        %v572 = vand.u32 %v181, 4294901760
        %v573 = vsub.f32 %v181, %v572
        %v574 = vand.u32 %v573, 4294901760
        %575 = vmatpush1.msra.mxu0 %v574
        %576 = vmatprep.subr.mxu0 0.0
        %v577 = vand.u32 %v182, 4294901760
        %v578 = vsub.f32 %v182, %v577
        %v579 = vand.u32 %v578, 4294901760
        %580 = vmatpush1.msra.mxu0 %v579
        %581 = vmatprep.subr.mxu0 0.0
        %582 = vmatpush1.msra.mxu0 0.0
        %583 = vmatprep.subr.mxu0 0.0
        %584 = vmatpush1.msra.mxu0 0.0
        %585 = vmatprep.subr.mxu0 0.0
        %586 = vmatpush1.msra.mxu0 0.0
        %587 = vmatprep.subr.mxu0 0.0
        %588 = vmatpush1.msra.mxu0 0.0
        %589 = vmatprep.subr.mxu0 0.0
        %590 = vmatpush1.msra.mxu0 0.0
        %591 = vmatprep.subr.mxu0 0.0
        %592 = vmatpush1.msra.mxu0 0.0
        %593 = vmatprep.subr.mxu0 0.0
        %594 = vmatpush1.msra.mxu0 0.0
        %595 = vmatprep.subr.mxu0 0.0
        %596 = vmatpush1.msra.mxu0 0.0
        %597 = vmatprep.subr.mxu0 0.0
        %598 = vmatpush1.msra.mxu0 0.0
        %599 = vmatprep.subr.mxu0 0.0
        %600 = vmatpush1.msra.mxu0 0.0
        %601 = vmatprep.subr.mxu0 0.0
        %602 = vmatpush1.msra.mxu0 0.0
        %603 = vmatprep.subr.mxu0 0.0
        %604 = vmatpush1.msra.mxu0 0.0
        %605 = vmatprep.subr.mxu0 0.0
        %606 = vmatpush1.msra.mxu0 0.0
        %607 = vmatprep.subr.mxu0 0.0
        %608 = vmatpush1.msra.mxu0 0.0
        %609 = vmatprep.subr.mxu0 0.0
        %610 = vmatpush1.msra.mxu0 0.0
        %611 = vmatprep.subr.mxu0 0.0
        %612 = vmatpush1.msra.mxu0 0.0
        %613 = vmatprep.subr.mxu0 0.0
        %614 = vmatpush1.msra.mxu0 0.0
        %615 = vmatprep.subr.mxu0 0.0
        %616 = vmatpush1.msra.mxu0 0.0
        %617 = vmatprep.subr.mxu0 0.0
        %618 = vmatpush1.msra.mxu0 0.0
        %619 = vmatprep.subr.mxu0 0.0
        %620 = vmatpush1.msra.mxu0 0.0
        %621 = vmatprep.subr.mxu0 0.0
        %622 = vmatpush1.msra.mxu0 0.0
        %623 = vmatprep.subr.mxu0 0.0
        %624 = vmatpush1.msra.mxu0 0.0
        %625 = vmatprep.subr.mxu0 0.0
        %626 = vmatpush1.msra.mxu0 0.0
        %627 = vmatprep.subr.mxu0 0.0
        %628 = vmatpush1.msra.mxu0 0.0
        %629 = vmatprep.subr.mxu0 0.0
        %630 = vmatpush1.msra.mxu0 0.0
        %631 = vmatprep.subr.mxu0 0.0
        %632 = vmatpush1.msra.mxu0 0.0
        %633 = vmatprep.subr.mxu0 0.0
        %634 = vmatpush1.msra.mxu0 0.0
        %635 = vmatprep.subr.mxu0 0.0
        %636 = vmatpush1.msra.mxu0 0.0
        %637 = vmatprep.mubr.f32.mxu0 0.0
        %v638 = vand.u32 %v198, 4294901760
        %639 = vmatmul.mubr.f32.gmra.mrb[0].mxu0 %v638
        %v640 = vpop.f32.mrb[0].mxu0
        %v641 = vadd.f32 %v550, %v640
        %v642 = vpop.f32.mrb[0].mxu0
        %643 = vmatprep.mubr.f32.mxu0 0.0
        %v644 = vand.u32 %v201, 4294901760
        %645 = vmatmul.mubr.f32.gmra.mrb[0].mxu0 %v644
        %v646 = vpop.f32.mrb[0].mxu0
        %v647 = vadd.f32 %v558, %v646
        %v648 = vpop.f32.mrb[0].mxu0
        %649 = vdwg.mxu0
        %650 = vmatprep.subr.mxu0 0.0
        %v651 = vand.u32 %v179, 4294901760
        %652 = vmatpush1.msra.mxu0 %v651
        %653 = vmatprep.subr.mxu0 0.0
        %v654 = vand.u32 %v180, 4294901760
        %655 = vmatpush1.msra.mxu0 %v654
        %656 = vmatprep.subr.mxu0 0.0
        %v657 = vand.u32 %v181, 4294901760
        %658 = vmatpush1.msra.mxu0 %v657
        %659 = vmatprep.subr.mxu0 0.0
        %v660 = vand.u32 %v182, 4294901760
        %661 = vmatpush1.msra.mxu0 %v660
        %662 = vmatprep.subr.mxu0 0.0
        %663 = vmatpush1.msra.mxu0 0.0
        %664 = vmatprep.subr.mxu0 0.0
        %665 = vmatpush1.msra.mxu0 0.0
        %666 = vmatprep.subr.mxu0 0.0
        %667 = vmatpush1.msra.mxu0 0.0
        %668 = vmatprep.subr.mxu0 0.0
        %669 = vmatpush1.msra.mxu0 0.0
        %670 = vmatprep.subr.mxu0 0.0
        %671 = vmatpush1.msra.mxu0 0.0
        %672 = vmatprep.subr.mxu0 0.0
        %673 = vmatpush1.msra.mxu0 0.0
        %674 = vmatprep.subr.mxu0 0.0
        %675 = vmatpush1.msra.mxu0 0.0
        %676 = vmatprep.subr.mxu0 0.0
        %677 = vmatpush1.msra.mxu0 0.0
        %678 = vmatprep.subr.mxu0 0.0
        %679 = vmatpush1.msra.mxu0 0.0
        %680 = vmatprep.subr.mxu0 0.0
        %681 = vmatpush1.msra.mxu0 0.0
        %682 = vmatprep.subr.mxu0 0.0
        %683 = vmatpush1.msra.mxu0 0.0
        %684 = vmatprep.subr.mxu0 0.0
        %685 = vmatpush1.msra.mxu0 0.0
        %686 = vmatprep.subr.mxu0 0.0
        %687 = vmatpush1.msra.mxu0 0.0
        %688 = vmatprep.subr.mxu0 0.0
        %689 = vmatpush1.msra.mxu0 0.0
        %690 = vmatprep.subr.mxu0 0.0
        %691 = vmatpush1.msra.mxu0 0.0
        %692 = vmatprep.subr.mxu0 0.0
        %693 = vmatpush1.msra.mxu0 0.0
        %694 = vmatprep.subr.mxu0 0.0
        %695 = vmatpush1.msra.mxu0 0.0
        %696 = vmatprep.subr.mxu0 0.0
        %697 = vmatpush1.msra.mxu0 0.0
        %698 = vmatprep.subr.mxu0 0.0
        %699 = vmatpush1.msra.mxu0 0.0
        %700 = vmatprep.subr.mxu0 0.0
        %701 = vmatpush1.msra.mxu0 0.0
        %702 = vmatprep.subr.mxu0 0.0
        %703 = vmatpush1.msra.mxu0 0.0
        %704 = vmatprep.subr.mxu0 0.0
        %705 = vmatpush1.msra.mxu0 0.0
        %706 = vmatprep.subr.mxu0 0.0
        %707 = vmatpush1.msra.mxu0 0.0
        %708 = vmatprep.subr.mxu0 0.0
        %709 = vmatpush1.msra.mxu0 0.0
        %710 = vmatprep.subr.mxu0 0.0
        %711 = vmatpush1.msra.mxu0 0.0
        %712 = vmatprep.subr.mxu0 0.0
        %713 = vmatpush1.msra.mxu0 0.0
        %714 = vmatprep.subr.mxu0 0.0
        %715 = vmatpush1.msra.mxu0 0.0
        %716 = vmatprep.subr.mxu0 0.0
        %717 = vmatpush1.msra.mxu0 0.0
        %718 = vmatprep.mubr.f32.mxu0 0.0
        %v719 = vand.u32 %v198, 4294901760
        %720 = vmatmul.mubr.f32.gmra.mrb[0].mxu0 %v719
        %v721 = vpop.f32.mrb[0].mxu0
        %v722 = vadd.f32 %v641, %v721
        %v723 = vpop.f32.mrb[0].mxu0
        %724 = vmatprep.mubr.f32.mxu0 0.0
        %v725 = vand.u32 %v201, 4294901760
        %726 = vmatmul.mubr.f32.gmra.mrb[0].mxu0 %v725
        %v727 = vpop.f32.mrb[0].mxu0
        %v728 = vadd.f32 %v647, %v727
        %v729 = vpop.f32.mrb[0].mxu0
        %730 = vdwg.mxu0
        %vm731 = vcmask 523264
        %v732 = vsel %vm731, %v722, 0.0
        %v733 = vsel %vm731, %v728, 0.0
        %v734 = vadd.f32 %v732, %v733
        %v735 = vrot.slane %v734, 4
        %v736 = vadd.f32 %v734, %v735
        %v737 = vrot.slane %v736, 2
        %v738 = vadd.f32 %v736, %v737
        %v739 = vrot.slane %v738, 1
        %v740 = vadd.f32 %v738, %v739
        %v741 = vrcp.pop 16.0
        %v742 = vmul.f32 %v740, %v741
        %v743 = vsub.f32 %v722, %v742
        %v744 = vsub.f32 %v728, %v742
        %v745 = vmul.f32 %v743, %v743
        %v746 = vmul.f32 %v744, %v744
        %v747 = vsel %vm731, %v745, 0.0
        %v748 = vsel %vm731, %v746, 0.0
        %v749 = vadd.f32 %v747, %v748
        %v750 = vrot.slane %v749, 4
        %v751 = vadd.f32 %v749, %v750
        %v752 = vrot.slane %v751, 2
        %v753 = vadd.f32 %v751, %v752
        %v754 = vrot.slane %v753, 1
        %v755 = vadd.f32 %v753, %v754
        %v756 = vmul.f32 %v755, %v741
        %v757 = vadd.f32 %v756, 1e-05
        %v758 = vrsqrt.pop %v757
        %v759 = vmul.f32 %v184, %v758
        %v760 = vlaneseq
        %v761 = vshrl.u32 %v760, 7
        %v762 = vsub.s32 0, %v761
        %v763 = vrot.slane %v759, %v762
        %v764 = vmul.f32 %v743, %v763
        %v765 = vmul.f32 %v744, %v763
        %v766 = vlaneseq
        %v767 = vshrl.u32 %v766, 7
        %v768 = vsub.s32 0, %v767
        %v769 = vrot.slane %v185, %v768
        %v770 = vadd.f32 %v764, %v769
        %v771 = vadd.f32 %v765, %v769
        %vm772 = vcmp.gt.f32.partialorder %v770, 0.0
        %vm773 = vcmp.gt.f32.partialorder %v771, 0.0
        %v774 = vmul.f32 %v770, 0.01
        %v775 = vmul.f32 %v771, 0.01
        %v776 = vsel %vm772, %v770, %v774
        %v777 = vsel %vm773, %v771, %v775
        %v778 = vadd.f32 %v776, %v188
        %v779 = vadd.f32 %v777, %v189
        %v780 = vlaneseq
        %v781 = vshrl.u32 %v780, 7
        %v782 = vsub.s32 0, %v781
        %v783 = vrot.slane %v186, %v782
        %v784 = vmul.f32 %v778, %v783
        %v785 = vmul.f32 %v779, %v783
        %v786 = vsel %vm731, %v784, 0.0
        %787 = vadd.xlane.f32.xlu0 %v786
        %v788 = vpop.xlane.xlu0 %787
        %v789 = vsel %vm731, %v785, 0.0
        %790 = vadd.xlane.f32.xlu0 %v789
        %v791 = vpop.xlane.xlu0 %790
        %v792 = vlaneseq
        %v793 = vshrl.u32 %v792, 7
        %v794 = vsub.s32 0, %v793
        %v795 = vrot.slane %v187, %v794
        %v796 = vadd.f32 %v788, %v795
        %v797 = vadd.f32 %v791, %v795
        %vm798 = vcmp.gt.f32.partialorder %v796, 0.0
        %vm799 = vcmp.gt.f32.partialorder %v797, 0.0
        %v800 = vmul.f32 %v796, 0.01
        %v801 = vmul.f32 %v797, 0.01
        %v802 = vsel %vm798, %v796, %v800
        %v803 = vsel %vm799, %v797, %v801
        %vm804 = vcmask 7168
        %805 = vst.msk [vmem:[%s178] sm:$0xff] %vm804, %v802
        %806 = vst.msk [vmem:[%s178 + $0x8] sm:$0xff] %vm804, %v803
        %p807 = scmp.lt.s32.totalorder %s17, 3
        %s808 = scalar_select %p807, %s17, 3
        %s809 = smul.addr %s808, 2
        %s810 = smul.addr %s809, 8
        %s811 = scalar_lea.vmem %s2, %s810
        // Predicated region
        $region37: #{tpu_custom_call.1} parent=27 // pred_check
          %p812 = pneg %p82
        $region38: #{tpu_custom_call.1} parent=27 // pred_check_branch
          %814 = sbr.rel (%p812) target = $region40
        $region39: #{tpu_custom_call.1} parent=27 // pred_region
          _
        $region40: #{tpu_custom_call.1} parent=27 // pred_fallthru
          _
      $region28: #{tpu_custom_call.1} parent=5 // pred_fallthru
        _
      %p815 = scmp.le.s32.totalorder 2, %s12
      // Predicated region
      $region41: #{tpu_custom_call.1} parent=5 // pred_check
        %p816 = pneg %p815
      $region42: #{tpu_custom_call.1} parent=5 // pred_check_branch
        %818 = sbr.rel (%p816) target = $region44
      $region43: #{tpu_custom_call.1} parent=5 // pred_region
        %s819 = ssub.s32 %s12, 2
        // Predicated region
        $region45: #{tpu_custom_call.1} parent=43 // pred_check
          %p820 = pneg %p88
        $region46: #{tpu_custom_call.1} parent=43 // pred_check_branch
          %822 = sbr.rel (%p820) target = $region48
        $region47: #{tpu_custom_call.1} parent=43 // pred_region
          %p823 = scmp.lt.s32.totalorder %s18, 3
          %s824 = scalar_select %p823, %s18, 3
          %s825 = smul.addr %s824, 2
          %s826 = smul.addr %s825, 8
          %s827 = scalar_lea.vmem %s2, %s826
        $region48: #{tpu_custom_call.1} parent=43 // pred_fallthru
          _
      $region44: #{tpu_custom_call.1} parent=5 // pred_fallthru
        _
    $region6: #{tpu_custom_call.1} parent=1 // loop_footer
      %s16 = sadd.s32 1, %s12
    $region7: #{tpu_custom_call.1} parent=1 // loop_footer_branch
      %11 = sbr.rel target = $region3
    $region8: #{tpu_custom_call.1} parent=1 // loop_exit
      _
    %828 = vsyncpa [#allocation3], 1
    %s829 = scalar_lea.sflag [#allocation3], 1
    %830 = vsyncpa %s829, 1
    %831 = vsyncpa [#allocation5], 1

</llo_original>
